<compile_context>
chip_gen: v7x
topology: tpu7x:2x2x1
jax: 0.10.0
libtpu: 0.0.40
codegen_flags: <defaults>
</compile_context>

<pallas_src>
import functools
import math

import jax
import jax.numpy as jnp
from jax.experimental import pallas as pl
from jax.experimental.pallas import tpu as pltpu


def _cdiv(a, b):
    return -(-a // b)


def _round_up(a, b):
    return _cdiv(a, b) * b


def _basicnn_kernel(x_ref, w1_ref, b1_ref, w2_ref, b2_ref, o_ref, *, classification):
    # On-chip bf16 cast of the streamed f32 batch tile (VPU work, hidden under DMA).
    x = x_ref[...].astype(jnp.bfloat16)

    # fc1 + bias + ReLU: bf16 feed, f32 accumulate on the MXU; elementwise in f32.
    h = jnp.dot(x, w1_ref[...], preferred_element_type=jnp.float32)
    h = jnp.maximum(h + b1_ref[...], 0.0)

    # fc2: bf16 feed, f32 accumulate. Output width is the *real* num_outputs.
    y = jnp.dot(h.astype(jnp.bfloat16), w2_ref[...],
                preferred_element_type=jnp.float32) + b2_ref[...]

    if classification:
        # Numerically stable log_softmax over the (unpadded) last dim.
        m = jnp.max(y, axis=-1, keepdims=True)
        s = y - m
        lse = jnp.log(jnp.sum(jnp.exp(s), axis=-1, keepdims=True))
        y = s - lse

    o_ref[...] = y.astype(o_ref.dtype)


def _choose_tile_b(batch, *, tile_b_max=2048, min_steps=8):
    """Batch tile: >= min_steps grid steps (pipelining / megacore), rows a multiple
    of 8 sublanes, minimal tail padding, capped at tile_b_max."""
    steps = max(min_steps, _cdiv(batch, tile_b_max))
    steps = min(steps, max(1, _cdiv(batch, 8)))   # tiles cannot be smaller than 8 rows
    return min(tile_b_max, max(8, _round_up(_cdiv(batch, steps), 8)))


def basic_nn_forward(x, w1, b1, w2, b2, task="classification", tile_b=None):
    """x: (B, num_inputs); w1: (num_inputs, H); b1: (1, H); w2: (H, O); b2: (1, O)."""
    B, num_inputs = x.shape
    hidden, num_outputs = w2.shape
    classification = task.lower() == "classification"

    if tile_b is None:
        tile_b = _choose_tile_b(B)
    else:
        tile_b = max(8, (int(tile_b) // 8) * 8)

    b_pad = _round_up(B, tile_b)
    x_f = x.astype(jnp.float32)          # mirrors input.float(); bf16 cast happens on-chip
    if b_pad != B:
        x_f = jnp.pad(x_f, ((0, b_pad - B), (0, 0)))   # zero rows, sliced away at the end

    # Small weights stay VMEM-resident in bf16; biases in f32.
    w1_bf = w1.astype(jnp.bfloat16)
    w2_bf = w2.astype(jnp.bfloat16)
    b1_f = b1.astype(jnp.float32)
    b2_f = b2.astype(jnp.float32)

    grid = (b_pad // tile_b,)

    # VMEM budget from the actual footprint (2 pipeline buffers for the streamed
    # tiles + resident weights + headroom), clamped to v7x's 64 MiB physical VMEM.
    tile_bytes = tile_b * (num_inputs + num_outputs) * 4
    resident_bytes = (w1_bf.size + w2_bf.size) * 2 + (b1_f.size + b2_f.size) * 4
    vmem_limit = 2 * tile_bytes + resident_bytes + (4 << 20)
    vmem_limit = int(min(max(vmem_limit, 8 << 20), 64 << 20))

    flops = 2 * b_pad * (num_inputs * hidden + hidden * num_outputs)
    transcendentals = b_pad * num_outputs if classification else 0
    bytes_accessed = (x_f.size * 4 + w1_bf.size * 2 + b1_f.size * 4
                      + w2_bf.size * 2 + b2_f.size * 4 + b_pad * num_outputs * 4)

    kernel = functools.partial(_basicnn_kernel, classification=classification)

    out = pl.pallas_call(
        kernel,
        out_shape=jax.ShapeDtypeStruct((b_pad, num_outputs), jnp.float32),
        grid=grid,
        in_specs=[
            pl.BlockSpec((tile_b, num_inputs), lambda i: (i, 0)),  # streamed batch tile
            pl.BlockSpec(w1_bf.shape, lambda i: (0, 0)),           # VMEM-resident weights
            pl.BlockSpec(b1_f.shape, lambda i: (0, 0)),
            pl.BlockSpec(w2_bf.shape, lambda i: (0, 0)),
            pl.BlockSpec(b2_f.shape, lambda i: (0, 0)),
        ],
        out_specs=pl.BlockSpec((tile_b, num_outputs), lambda i: (i, 0)),
        compiler_params=pltpu.CompilerParams(
            dimension_semantics=("parallel",),          # batch tiles across v7x's 2 TCs
            vmem_limit_bytes=vmem_limit),
        cost_estimate=pl.CostEstimate(
            flops=flops, transcendentals=transcendentals,
            bytes_accessed=bytes_accessed),
    )(x_f, w1_bf, b1_f, w2_bf, b2_f)

    return out[:B] if b_pad != B else out


def _init_linear(key, fan_in, fan_out):
    """Mimics nn.Linear default init: U(-1/sqrt(fan_in), 1/sqrt(fan_in)).
    Weight returned as (fan_in, fan_out) (transposed vs. PyTorch storage)."""
    kw, kb = jax.random.split(key)
    bound = 1.0 / math.sqrt(fan_in)
    w = jax.random.uniform(kw, (fan_in, fan_out), jnp.float32, -bound, bound)
    b = jax.random.uniform(kb, (1, fan_out), jnp.float32, -bound, bound)
    return w, b


def _reference_bf16(x, w1, b1, w2, b2, task):
    """Reference with the same bf16-feed / f32-accumulate dtype choices as the kernel."""
    h = jnp.dot(x.astype(jnp.bfloat16), w1.astype(jnp.bfloat16),
                preferred_element_type=jnp.float32) + b1
    h = jnp.maximum(h, 0.0)
    y = jnp.dot(h.astype(jnp.bfloat16), w2.astype(jnp.bfloat16),
                preferred_element_type=jnp.float32) + b2
    if task.lower() == "classification":
        y = jax.nn.log_softmax(y, axis=-1)
    return y


def _reference_f32(x, w1, b1, w2, b2, task):
    """Pure-f32 reference matching the PyTorch module exactly (loose check)."""
    h = jax.nn.relu(x.astype(jnp.float32) @ w1 + b1)
    y = h @ w2 + b2
    if task.lower() == "classification":
        y = jax.nn.log_softmax(y, axis=-1)
    return y


if __name__ == "__main__":
    num_inputs, hidden, num_outputs = 16, 32, 8

    root = jax.random.PRNGKey(0)
    kx, k1, k2 = jax.random.split(root, 3)
    w1, b1 = _init_linear(k1, num_inputs, hidden)
    w2, b2 = _init_linear(k2, hidden, num_outputs)

    # Batch large enough to exercise a multi-step batch grid (8 tiles of 64).
    batch = 512
    x = jax.random.normal(kx, (batch, num_inputs), jnp.float32)

    out = basic_nn_forward(x, w1, b1, w2, b2, task="classification")
    out = jax.block_until_ready(out)
    assert out.shape == (batch, num_outputs)

    ref_bf = _reference_bf16(x, w1, b1, w2, b2, "classification")
    assert jnp.allclose(out, ref_bf, rtol=1e-3, atol=1e-3), "mismatch vs bf16 reference"
    ref_f32 = _reference_f32(x, w1, b1, w2, b2, "classification")
    assert jnp.allclose(out, ref_f32, rtol=5e-2, atol=5e-2), "mismatch vs f32 reference"

    # Ragged batch + regression head exercise adaptive tiling / the non-softmax path.
    xr = jax.random.normal(jax.random.PRNGKey(1), (300, num_inputs), jnp.float32)
    out_r = jax.block_until_ready(
        basic_nn_forward(xr, w1, b1, w2, b2, task="regression"))
    assert out_r.shape == (300, num_outputs)
    ref_r = _reference_bf16(xr, w1, b1, w2, b2, "regression")
    assert jnp.allclose(out_r, ref_r, rtol=1e-3, atol=1e-3), "regression mismatch"

    # Tiny batch (single grid step) sanity check.
    xt = jax.random.normal(jax.random.PRNGKey(2), (2, num_inputs), jnp.float32)
    out_t = jax.block_until_ready(
        basic_nn_forward(xt, w1, b1, w2, b2, task="classification"))
    assert out_t.shape == (2, num_outputs)
    ref_t = _reference_bf16(xt, w1, b1, w2, b2, "classification")
    assert jnp.allclose(out_t, ref_t, rtol=1e-3, atol=1e-3), "tiny-batch mismatch"

    print("KERNEL_OK")
</pallas_src>

<mosaic_0001>
module attributes {stable_mosaic.version = 11 : i64} {
  func.func @_basicnn_kernel(%arg0: i32, %arg1: memref<64x16xf32, #tpu.memory_space<vmem>>, %arg2: memref<16x32xbf16, #tpu.memory_space<vmem>>, %arg3: memref<1x32xf32, #tpu.memory_space<vmem>>, %arg4: memref<32x8xbf16, #tpu.memory_space<vmem>>, %arg5: memref<1x8xf32, #tpu.memory_space<vmem>>, %arg6: memref<64x8xf32, #tpu.memory_space<vmem>>) attributes {dimension_semantics = [#tpu.dimension_semantics<parallel>], iteration_bounds = array<i64: 8>, scalar_prefetch = 0 : i64, scratch_operands = 0 : i64, tpu.core_type = #tpu.core_type<tc>, window_params = [{transform_indices = @transform_0, window_bounds = array<i64: 64, 16>}, {pipeline_mode = #tpu.pipeline_mode<synchronous>, transform_indices = @transform_1, window_bounds = array<i64: 16, 32>}, {pipeline_mode = #tpu.pipeline_mode<synchronous>, transform_indices = @transform_2, window_bounds = array<i64: 1, 32>}, {pipeline_mode = #tpu.pipeline_mode<synchronous>, transform_indices = @transform_3, window_bounds = array<i64: 32, 8>}, {pipeline_mode = #tpu.pipeline_mode<synchronous>, transform_indices = @transform_4, window_bounds = array<i64: 1, 8>}, {transform_indices = @transform_5, window_bounds = array<i64: 64, 8>}]} {
    %c0 = arith.constant 0 : index
    %c0_0 = arith.constant 0 : index
    %0 = vector.load %arg1[%c0, %c0_0] : memref<64x16xf32, #tpu.memory_space<vmem>>, vector<64x16xf32>
    %1 = arith.truncf %0 : vector<64x16xf32> to vector<64x16xbf16>
    %c0_1 = arith.constant 0 : index
    %c0_2 = arith.constant 0 : index
    %2 = vector.load %arg2[%c0_1, %c0_2] : memref<16x32xbf16, #tpu.memory_space<vmem>>, vector<16x32xbf16>
    %cst = arith.constant dense<0.000000e+00> : vector<64x32xf32>
    %3 = tpu.matmul %1, %2, %cst {dimension_numbers = #tpu.dot_dimension_numbers<[1], [0], [0], [1], [0, 0, 1, 1], [], []>} : vector<64x16xbf16>, vector<16x32xbf16>, vector<64x32xf32> -> vector<64x32xf32>
    %c0_3 = arith.constant 0 : index
    %c0_4 = arith.constant 0 : index
    %4 = vector.load %arg3[%c0_3, %c0_4] : memref<1x32xf32, #tpu.memory_space<vmem>>, vector<1x32xf32>
    %5 = vector.broadcast %4 : vector<1x32xf32> to vector<64x32xf32>
    %6 = arith.addf %3, %5 : vector<64x32xf32>
    %cst_5 = arith.constant 0.000000e+00 : f32
    %7 = vector.broadcast %cst_5 : f32 to vector<64x32xf32>
    %8 = arith.maximumf %6, %7 : vector<64x32xf32>
    %9 = arith.truncf %8 : vector<64x32xf32> to vector<64x32xbf16>
    %c0_6 = arith.constant 0 : index
    %c0_7 = arith.constant 0 : index
    %10 = vector.load %arg4[%c0_6, %c0_7] : memref<32x8xbf16, #tpu.memory_space<vmem>>, vector<32x8xbf16>
    %cst_8 = arith.constant dense<0.000000e+00> : vector<64x8xf32>
    %11 = tpu.matmul %9, %10, %cst_8 {dimension_numbers = #tpu.dot_dimension_numbers<[1], [0], [0], [1], [0, 0, 1, 1], [], []>} : vector<64x32xbf16>, vector<32x8xbf16>, vector<64x8xf32> -> vector<64x8xf32>
    %c0_9 = arith.constant 0 : index
    %c0_10 = arith.constant 0 : index
    %12 = vector.load %arg5[%c0_9, %c0_10] : memref<1x8xf32, #tpu.memory_space<vmem>>, vector<1x8xf32>
    %13 = vector.broadcast %12 : vector<1x8xf32> to vector<64x8xf32>
    %14 = arith.addf %11, %13 : vector<64x8xf32>
    %cst_11 = arith.constant dense<0xFF800000> : vector<64xf32>
    %15 = vector.multi_reduction <maximumf>, %14, %cst_11 [1] : vector<64x8xf32> to vector<64xf32>
    %16 = vector.shape_cast %15 : vector<64xf32> to vector<64x1xf32>
    %17 = vector.broadcast %16 : vector<64x1xf32> to vector<64x8xf32>
    %18 = arith.subf %14, %17 : vector<64x8xf32>
    %19 = math.exp %18 : vector<64x8xf32>
    %cst_12 = arith.constant dense<0.000000e+00> : vector<64xf32>
    %20 = vector.multi_reduction <add>, %19, %cst_12 [1] : vector<64x8xf32> to vector<64xf32>
    %21 = vector.shape_cast %20 : vector<64xf32> to vector<64x1xf32>
    %22 = math.log %21 : vector<64x1xf32>
    %23 = vector.broadcast %22 : vector<64x1xf32> to vector<64x8xf32>
    %24 = arith.subf %18, %23 : vector<64x8xf32>
    %c0_13 = arith.constant 0 : index
    %c0_14 = arith.constant 0 : index
    %25 = vector.load %arg6[%c0_13, %c0_14] : memref<64x8xf32, #tpu.memory_space<vmem>>, vector<64x8xf32>
    tpu.vector_store %arg6[%c0_13, %c0_14], %24 {strides = array<i32>} : memref<64x8xf32, #tpu.memory_space<vmem>>, vector<64x8xf32>,
    return
  }
  func.func @transform_0(%arg0: i32) -> (i32, i32) {
    %c0_i32 = arith.constant 0 : i32
    %c0_i32_0 = arith.constant 0 : i32
    return %arg0, %c0_i32 : i32, i32
  }
  func.func @transform_1(%arg0: i32) -> (i32, i32) {
    %c0_i32 = arith.constant 0 : i32
    %c0_i32_0 = arith.constant 0 : i32
    %c0_i32_1 = arith.constant 0 : i32
    return %c0_i32, %c0_i32_0 : i32, i32
  }
  func.func @transform_2(%arg0: i32) -> (i32, i32) {
    %c0_i32 = arith.constant 0 : i32
    %c0_i32_0 = arith.constant 0 : i32
    %c0_i32_1 = arith.constant 0 : i32
    return %c0_i32, %c0_i32_0 : i32, i32
  }
  func.func @transform_3(%arg0: i32) -> (i32, i32) {
    %c0_i32 = arith.constant 0 : i32
    %c0_i32_0 = arith.constant 0 : i32
    %c0_i32_1 = arith.constant 0 : i32
    return %c0_i32, %c0_i32_0 : i32, i32
  }
  func.func @transform_4(%arg0: i32) -> (i32, i32) {
    %c0_i32 = arith.constant 0 : i32
    %c0_i32_0 = arith.constant 0 : i32
    %c0_i32_1 = arith.constant 0 : i32
    return %c0_i32, %c0_i32_0 : i32, i32
  }
  func.func @transform_5(%arg0: i32) -> (i32, i32) {
    %c0_i32 = arith.constant 0 : i32
    %c0_i32_0 = arith.constant 0 : i32
    return %arg0, %c0_i32 : i32, i32
  }
}

</mosaic_0001>

<llo_original>
// kernel: tpu_custom_call.1
$region0: #{tpu_custom_call.1}
  #allocation0 [shape = 'u32[]', space=smem, size = 0x4, offset = 0x4, fixed_abs, tag = 'smem constant byte address 0x4 - core index']
  #allocation1 [shape = 'u32[144,128]{1,0:T(1,128)}', space=vmem, size = 0x12000, scoped, tag = 'internal scratch']
  %s0 = inlined_call_operand.vmem [shape: f32[512,16], index: 0, kind: input, shape index: {}]
  %s1 = inlined_call_operand.vmem [shape: bf16[16,32], index: 1, kind: input, shape index: {}]
  %s2 = inlined_call_operand.vmem [shape: f32[1,32], index: 2, kind: input, shape index: {}]
  %s3 = inlined_call_operand.vmem [shape: bf16[32,8], index: 3, kind: input, shape index: {}]
  %s4 = inlined_call_operand.vmem [shape: f32[1,8], index: 4, kind: input, shape index: {}]
  %s5 = inlined_call_operand.vmem [shape: f32[512,8], index: 5, kind: output, shape index: {}]
  %s6 = sld [smem:[#allocation0]]
  $region53: #{tpu_custom_call.1} parent=0
    _
  %s8 = ssub.s32 1, %s6
  %s9 = scalar_select 0, %s8, %s6
  loop: start=0, step=1, limit=10
  $region2: #{tpu_custom_call.1} parent=0 // loop_pre_header
    _
  $region3: #{tpu_custom_call.1} parent=0 // loop_header
    %s11 = sphi 0, %s15
    %p12 = scmp.ge.s32.totalorder %s11, 10
    %s21 = sphi 0, %s23
    %s24 = sphi 0, %s21
    %s25 = sphi 0, %s24
    %s41 = sphi 0, %s25
    %s45 = sphi 0, %s45
    %s47 = sphi 0, %s45
    %s48 = sphi 0, %s47
    %s62 = sphi 0, %s48
    %s66 = sphi 0, %s66
    %s68 = sphi 0, %s66
    %s69 = sphi 0, %s68
    %s83 = sphi 0, %s69
    %s87 = sphi 0, %s87
    %s89 = sphi 0, %s87
    %s90 = sphi 0, %s89
    %s104 = sphi 0, %s90
    %s108 = sphi 0, %s108
    %s110 = sphi 0, %s108
    %s111 = sphi 0, %s110
    %s125 = sphi 0, %s111
    %s131 = sphi 0, %s133
    %s134 = sphi 0, %s131
    %s135 = sphi 0, %s134
    %s151 = sphi 0, %s135
  $region4: #{tpu_custom_call.1} parent=0 // loop_header_branch
    %14 = sbr.rel (%p12) target = $region8
  $region5: #{tpu_custom_call.1} parent=0 // loop_body
    %s16 = ssub.s32 %s11, 1
    %s17 = ssub.s32 %s11, 2
    %s18 = sadd.s32 %s11, 1
    %s19 = ssub.s32 %s11, %s18
    %p20 = scmp.eq.s32.totalorder %s19, 0
    %s22 = sadd.s32 %s21, 1
    %s23 = scalar_select %p20, %s21, %s22
    %p26 = pneg %p20
    %p27 = scmp.eq.s32.totalorder %s11, 7
    %p28 = por %p26, %p27
    %p29 = scmp.ne.s32.totalorder %s21, %s24
    %p30 = scmp.eq.s32.totalorder %s11, 0
    %p31 = por %p29, %p30
    %p32 = scmp.ne.s32.totalorder %s21, %s24
    %p33 = scmp.eq.s32.totalorder %s16, 7
    %p34 = por %p32, %p33
    %p35 = scmp.ne.s32.totalorder %s24, %s25
    %p36 = scmp.eq.s32.totalorder %s16, 0
    %p37 = por %p35, %p36
    %p38 = scmp.ne.s32.totalorder %s24, %s25
    %p39 = scmp.eq.s32.totalorder %s17, 7
    %p40 = por %p38, %p39
    %p42 = scmp.ne.s32.totalorder %s25, %s41
    %p43 = scmp.eq.s32.totalorder %s17, 0
    %p44 = por %p42, %p43
    %s46 = sadd.s32 %s45, 1
    %p49 = scmp.eq.s32.totalorder %s11, 7
    %p50 = scmp.ne.s32.totalorder %s45, %s47
    %p51 = scmp.eq.s32.totalorder %s11, 0
    %p52 = por %p50, %p51
    %p53 = scmp.ne.s32.totalorder %s45, %s47
    %p54 = scmp.eq.s32.totalorder %s16, 7
    %p55 = por %p53, %p54
    %p56 = scmp.ne.s32.totalorder %s47, %s48
    %p57 = scmp.eq.s32.totalorder %s16, 0
    %p58 = por %p56, %p57
    %p59 = scmp.ne.s32.totalorder %s47, %s48
    %p60 = scmp.eq.s32.totalorder %s17, 7
    %p61 = por %p59, %p60
    %p63 = scmp.ne.s32.totalorder %s48, %s62
    %p64 = scmp.eq.s32.totalorder %s17, 0
    %p65 = por %p63, %p64
    %s67 = sadd.s32 %s66, 1
    %p70 = scmp.eq.s32.totalorder %s11, 7
    %p71 = scmp.ne.s32.totalorder %s66, %s68
    %p72 = scmp.eq.s32.totalorder %s11, 0
    %p73 = por %p71, %p72
    %p74 = scmp.ne.s32.totalorder %s66, %s68
    %p75 = scmp.eq.s32.totalorder %s16, 7
    %p76 = por %p74, %p75
    %p77 = scmp.ne.s32.totalorder %s68, %s69
    %p78 = scmp.eq.s32.totalorder %s16, 0
    %p79 = por %p77, %p78
    %p80 = scmp.ne.s32.totalorder %s68, %s69
    %p81 = scmp.eq.s32.totalorder %s17, 7
    %p82 = por %p80, %p81
    %p84 = scmp.ne.s32.totalorder %s69, %s83
    %p85 = scmp.eq.s32.totalorder %s17, 0
    %p86 = por %p84, %p85
    %s88 = sadd.s32 %s87, 1
    %p91 = scmp.eq.s32.totalorder %s11, 7
    %p92 = scmp.ne.s32.totalorder %s87, %s89
    %p93 = scmp.eq.s32.totalorder %s11, 0
    %p94 = por %p92, %p93
    %p95 = scmp.ne.s32.totalorder %s87, %s89
    %p96 = scmp.eq.s32.totalorder %s16, 7
    %p97 = por %p95, %p96
    %p98 = scmp.ne.s32.totalorder %s89, %s90
    %p99 = scmp.eq.s32.totalorder %s16, 0
    %p100 = por %p98, %p99
    %p101 = scmp.ne.s32.totalorder %s89, %s90
    %p102 = scmp.eq.s32.totalorder %s17, 7
    %p103 = por %p101, %p102
    %p105 = scmp.ne.s32.totalorder %s90, %s104
    %p106 = scmp.eq.s32.totalorder %s17, 0
    %p107 = por %p105, %p106
    %s109 = sadd.s32 %s108, 1
    %p112 = scmp.eq.s32.totalorder %s11, 7
    %p113 = scmp.ne.s32.totalorder %s108, %s110
    %p114 = scmp.eq.s32.totalorder %s11, 0
    %p115 = por %p113, %p114
    %p116 = scmp.ne.s32.totalorder %s108, %s110
    %p117 = scmp.eq.s32.totalorder %s16, 7
    %p118 = por %p116, %p117
    %p119 = scmp.ne.s32.totalorder %s110, %s111
    %p120 = scmp.eq.s32.totalorder %s16, 0
    %p121 = por %p119, %p120
    %p122 = scmp.ne.s32.totalorder %s110, %s111
    %p123 = scmp.eq.s32.totalorder %s17, 7
    %p124 = por %p122, %p123
    %p126 = scmp.ne.s32.totalorder %s111, %s125
    %p127 = scmp.eq.s32.totalorder %s17, 0
    %p128 = por %p126, %p127
    %s129 = ssub.s32 %s11, %s18
    %p130 = scmp.eq.s32.totalorder %s129, 0
    %s132 = sadd.s32 %s131, 1
    %s133 = scalar_select %p130, %s131, %s132
    %p136 = pneg %p130
    %p137 = scmp.eq.s32.totalorder %s11, 7
    %p138 = por %p136, %p137
    %p139 = scmp.ne.s32.totalorder %s131, %s134
    %p140 = scmp.eq.s32.totalorder %s11, 0
    %p141 = por %p139, %p140
    %p142 = scmp.ne.s32.totalorder %s131, %s134
    %p143 = scmp.eq.s32.totalorder %s16, 7
    %p144 = por %p142, %p143
    %p145 = scmp.ne.s32.totalorder %s134, %s135
    %p146 = scmp.eq.s32.totalorder %s16, 0
    %p147 = por %p145, %p146
    %p148 = scmp.ne.s32.totalorder %s134, %s135
    %p149 = scmp.eq.s32.totalorder %s17, 7
    %p150 = por %p148, %p149
    %p152 = scmp.ne.s32.totalorder %s135, %s151
    %p153 = scmp.eq.s32.totalorder %s17, 0
    %p154 = por %p152, %p153
    %p155 = scmp.le.s32.totalorder 1, %s11
    %p156 = scmp.lt.s32.totalorder %s11, 9
    %p157 = pnand %p155, %p156
    %p158 = pneg %p157
    // Predicated region
    $region9: #{tpu_custom_call.1} parent=5 // pred_check
      _
    $region10: #{tpu_custom_call.1} parent=5 // pred_check_branch
      %160 = sbr.rel (%p157) target = $region12
    $region11: #{tpu_custom_call.1} parent=5 // pred_region
      %s161 = ssub.s32 %s11, 1
      // Predicated region
      $region13: #{tpu_custom_call.1} parent=11 // pred_check
        %p162 = pneg %p58
      $region14: #{tpu_custom_call.1} parent=11 // pred_check_branch
        %164 = sbr.rel (%p162) target = $region16
      $region15: #{tpu_custom_call.1} parent=11 // pred_region
        _
      $region16: #{tpu_custom_call.1} parent=11 // pred_fallthru
        _
      // Predicated region
      $region17: #{tpu_custom_call.1} parent=11 // pred_check
        %p165 = pneg %p79
      $region18: #{tpu_custom_call.1} parent=11 // pred_check_branch
        %167 = sbr.rel (%p165) target = $region20
      $region19: #{tpu_custom_call.1} parent=11 // pred_region
        _
      $region20: #{tpu_custom_call.1} parent=11 // pred_fallthru
        _
      // Predicated region
      $region21: #{tpu_custom_call.1} parent=11 // pred_check
        %p168 = pneg %p100
      $region22: #{tpu_custom_call.1} parent=11 // pred_check_branch
        %170 = sbr.rel (%p168) target = $region24
      $region23: #{tpu_custom_call.1} parent=11 // pred_region
        _
      $region24: #{tpu_custom_call.1} parent=11 // pred_fallthru
        _
      // Predicated region
      $region25: #{tpu_custom_call.1} parent=11 // pred_check
        %p171 = pneg %p121
      $region26: #{tpu_custom_call.1} parent=11 // pred_check_branch
        %173 = sbr.rel (%p171) target = $region28
      $region27: #{tpu_custom_call.1} parent=11 // pred_region
        _
      $region28: #{tpu_custom_call.1} parent=11 // pred_fallthru
        _
    $region12: #{tpu_custom_call.1} parent=5 // pred_fallthru
      _
    %p174 = scmp.lt.s32.totalorder %s11, 8
    // Predicated region
    $region29: #{tpu_custom_call.1} parent=5 // pred_check
      %p175 = pneg %p174
    $region30: #{tpu_custom_call.1} parent=5 // pred_check_branch
      %177 = sbr.rel (%p175) target = $region32
    $region31: #{tpu_custom_call.1} parent=5 // pred_region
      // Predicated region
      $region33: #{tpu_custom_call.1} parent=31 // pred_check
        %p178 = pneg %p31
      $region34: #{tpu_custom_call.1} parent=31 // pred_check_branch
        %180 = sbr.rel (%p178) target = $region36
      $region35: #{tpu_custom_call.1} parent=31 // pred_region
        %s181 = smul.u32 8, %s11
        %p182 = scmp.lt.s32.totalorder %s181, 63
        %s183 = scalar_select %p182, %s181, 63
        %s184 = smul.addr %s183, 8
        %s185 = scalar_lea.vmem %s0, %s184
        %s186 = smul.u32 8, %s11
      $region36: #{tpu_custom_call.1} parent=31 // pred_fallthru
        _
    $region32: #{tpu_custom_call.1} parent=5 // pred_fallthru
      _
    %p187 = scmp.le.s32.totalorder 1, %s11
    %p188 = scmp.lt.s32.totalorder %s11, 9
    %p189 = pnand %p187, %p188
    %p190 = pneg %p189
    // Predicated region
    $region37: #{tpu_custom_call.1} parent=5 // pred_check
      _
    $region38: #{tpu_custom_call.1} parent=5 // pred_check_branch
      %192 = sbr.rel (%p189) target = $region40
    $region39: #{tpu_custom_call.1} parent=5 // pred_region
      %s193 = ssub.s32 %s11, 1
      %s194 = smul.u32 8, %s16
      %p195 = scmp.lt.s32.totalorder %s194, 63
      %s196 = scalar_select %p195, %s194, 63
      %s197 = smul.addr %s196, 8
      %s198 = scalar_lea.vmem %s0, %s197
      %p199 = pneg %p37
      %p200 = pneg %p34
      %p201 = pneg %p58
      %p202 = pneg %p55
      %p203 = pneg %p79
      %p204 = pneg %p76
      %p205 = pneg %p100
      %p206 = pneg %p97
      %p207 = pneg %p121
      %p208 = pneg %p118
      %p209 = pneg %p147
      %p210 = pneg %p144
      %s211 = smul.u32 8, %s16
      %p212 = scmp.lt.s32.totalorder %s211, 63
      %s213 = scalar_select %p212, %s211, 63
      %s214 = smul.addr %s213, 8
      %s215 = scalar_lea.vmem %s5, %s214
      %s216 = smul.u32 8, %s16
      %p217 = scmp.lt.s32.totalorder %s216, 63
      %s218 = scalar_select %p217, %s216, 63
      %s219 = smul.addr %s218, 8
      %s220 = scalar_lea.vmem %s0, %s219
      %s221 = smul.u32 8, %s16
      %s222 = smul.u32 8, %s16
      %p223 = scmp.lt.s32.totalorder %s222, 63
      %s224 = scalar_select %p223, %s222, 63
      %s225 = smul.addr %s224, 8
      %s226 = scalar_lea.vmem %s5, %s225
      %s227 = smul.u32 8, %s16
      %v229 = vld [vmem:[%s220] sm:$0xff]
      %v230 = vld [vmem:[%s220 + $0x8] sm:$0xff]
      %v231 = vld [vmem:[%s220 + $0x10] sm:$0xff]
      %v232 = vld [vmem:[%s220 + $0x18] sm:$0xff]
      %v233 = vld [vmem:[%s220 + $0x20] sm:$0xff]
      %v234 = vld [vmem:[%s220 + $0x28] sm:$0xff]
      %v235 = vld [vmem:[%s220 + $0x30] sm:$0xff]
      %v236 = vld [vmem:[%s220 + $0x38] sm:$0xff]
      %v237 = vpack.c.bf16 %v230, %v229
      %v238 = vpack.c.bf16 %v232, %v231
      %v239 = vpack.c.bf16 %v234, %v233
      %v240 = vpack.c.bf16 %v236, %v235
      %v241 = vld [vmem:[%s1] sm:$0xf]
      %v242 = vld [vmem:[%s1 + $0x4] sm:$0xf]
      %v243 = vld [vmem:[%s2] sm:$0x1]
      %v245 = vlaneseq
      %v246 = vshrl.u32 %v245, 7
      %v247 = vsub.s32 0, %v246
      %v248 = vrot.slane %v243, %v247
      %v252 = vunpack.c.l.b16 %v241
      %v253 = vunpack.c.l.b16 %v242
      %v254 = vpack.c.b16 %v253, %v252
      %vm256 = vcmask 130048
      %v258 = vsel %vm256, %v237, 0
      %v261 = vsel %vm256, %v238, 0
      %v264 = vsel %vm256, %v239, 0
      %v267 = vsel %vm256, %v240, 0
      %269 = vmatprep.subr.bf16.mxu0 0
      %270 = vmatpush1.bf16.msra.mxu0 %v254
      %271 = vmatprep.subr.bf16.mxu0 0
      %272 = vmatpush1.bf16.msra.mxu0 0
      %273 = vmatprep.subr.bf16.mxu0 0
      %274 = vmatpush1.bf16.msra.mxu0 0
      %275 = vmatprep.subr.bf16.mxu0 0
      %276 = vmatpush1.bf16.msra.mxu0 0
      %277 = vmatprep.subr.bf16.mxu0 0
      %278 = vmatpush1.bf16.msra.mxu0 0
      %279 = vmatprep.subr.bf16.mxu0 0
      %280 = vmatpush1.bf16.msra.mxu0 0
      %281 = vmatprep.subr.bf16.mxu0 0
      %282 = vmatpush1.bf16.msra.mxu0 0
      %283 = vmatprep.subr.bf16.mxu0 0
      %284 = vmatpush1.bf16.msra.mxu0 0
      %285 = vmatprep.subr.bf16.mxu0 0
      %286 = vmatpush1.bf16.msra.mxu0 0
      %287 = vmatprep.subr.bf16.mxu0 0
      %288 = vmatpush1.bf16.msra.mxu0 0
      %289 = vmatprep.subr.bf16.mxu0 0
      %290 = vmatpush1.bf16.msra.mxu0 0
      %291 = vmatprep.subr.bf16.mxu0 0
      %292 = vmatpush1.bf16.msra.mxu0 0
      %293 = vmatprep.subr.bf16.mxu0 0
      %294 = vmatpush1.bf16.msra.mxu0 0
      %295 = vmatprep.subr.bf16.mxu0 0
      %296 = vmatpush1.bf16.msra.mxu0 0
      %297 = vmatprep.subr.bf16.mxu0 0
      %298 = vmatpush1.bf16.msra.mxu0 0
      %299 = vmatprep.subr.bf16.mxu0 0
      %300 = vmatpush1.bf16.msra.mxu0 0
      %301 = vmatprep.mubr.bf16.mxu0 0
      %302 = vmatmul.mubr.bf16.gmra.mrb[0].mxu0 %v258
      %v303 = vpop.f32.mrb[0].mxu0
      %v304 = vadd.f32 %v248, %v303
      %v305 = vpop.f32.mrb[0].mxu0
      %v306 = vpop.f32.mrb[0].mxu0
      %v307 = vadd.f32 %v248, %v306
      %v308 = vpop.f32.mrb[0].mxu0
      %309 = vmatprep.mubr.bf16.mxu0 0
      %310 = vmatmul.mubr.bf16.gmra.mrb[0].mxu0 %v261
      %v311 = vpop.f32.mrb[0].mxu0
      %v312 = vadd.f32 %v248, %v311
      %v313 = vpop.f32.mrb[0].mxu0
      %v314 = vpop.f32.mrb[0].mxu0
      %v315 = vadd.f32 %v248, %v314
      %v316 = vpop.f32.mrb[0].mxu0
      %317 = vmatprep.mubr.bf16.mxu0 0
      %318 = vmatmul.mubr.bf16.gmra.mrb[0].mxu0 %v264
      %v319 = vpop.f32.mrb[0].mxu0
      %v320 = vadd.f32 %v248, %v319
      %v321 = vpop.f32.mrb[0].mxu0
      %v322 = vpop.f32.mrb[0].mxu0
      %v323 = vadd.f32 %v248, %v322
      %v324 = vpop.f32.mrb[0].mxu0
      %325 = vmatprep.mubr.bf16.mxu0 0
      %326 = vmatmul.mubr.bf16.gmra.mrb[0].mxu0 %v267
      %v327 = vpop.f32.mrb[0].mxu0
      %v328 = vadd.f32 %v248, %v327
      %v329 = vpop.f32.mrb[0].mxu0
      %v330 = vpop.f32.mrb[0].mxu0
      %v331 = vadd.f32 %v248, %v330
      %v332 = vpop.f32.mrb[0].mxu0
      %333 = vdwg.mxu0
      %v334 = vmax.f32 %v304, 0.0
      %v335 = vmax.f32 %v307, 0.0
      %v336 = vmax.f32 %v312, 0.0
      %v337 = vmax.f32 %v315, 0.0
      %v338 = vmax.f32 %v320, 0.0
      %v339 = vmax.f32 %v323, 0.0
      %v340 = vmax.f32 %v328, 0.0
      %v341 = vmax.f32 %v331, 0.0
      %v342 = vpack.c.bf16 %v335, %v334
      %v343 = vpack.c.bf16 %v337, %v336
      %v344 = vpack.c.bf16 %v339, %v338
      %v345 = vpack.c.bf16 %v341, %v340
      %v346 = vld [vmem:[%s3] sm:$0xf]
      %v347 = vld [vmem:[%s3 + $0x4] sm:$0xf]
      %v348 = vld [vmem:[%s3 + $0x8] sm:$0xf]
      %v349 = vld [vmem:[%s3 + $0xc] sm:$0xf]
      %v350 = vld [vmem:[%s4] sm:$0x1]
      %v352 = vlaneseq
      %v353 = vshrl.u32 %v352, 7
      %v354 = vsub.s32 0, %v353
      %v355 = vrot.slane %v350, %v354
      %v361 = vunpack.c.l.b16 %v346
      %v362 = vunpack.c.l.b16 %v347
      %v363 = vunpack.c.l.b16 %v348
      %v364 = vunpack.c.l.b16 %v349
      %v365 = vpack.c.b16 %v362, %v361
      %v366 = vpack.c.b16 %v364, %v363
      %vm369 = vcmask 261120
      %v371 = vsel %vm369, %v342, 0
      %v374 = vsel %vm369, %v343, 0
      %v377 = vsel %vm369, %v344, 0
      %v380 = vsel %vm369, %v345, 0
      %382 = vmatprep.subr.bf16.mxu0 0
      %383 = vmatpush1.bf16.msra.mxu0 %v365
      %384 = vmatprep.subr.bf16.mxu0 0
      %385 = vmatpush1.bf16.msra.mxu0 %v366
      %386 = vmatprep.subr.bf16.mxu0 0
      %387 = vmatpush1.bf16.msra.mxu0 0
      %388 = vmatprep.subr.bf16.mxu0 0
      %389 = vmatpush1.bf16.msra.mxu0 0
      %390 = vmatprep.subr.bf16.mxu0 0
      %391 = vmatpush1.bf16.msra.mxu0 0
      %392 = vmatprep.subr.bf16.mxu0 0
      %393 = vmatpush1.bf16.msra.mxu0 0
      %394 = vmatprep.subr.bf16.mxu0 0
      %395 = vmatpush1.bf16.msra.mxu0 0
      %396 = vmatprep.subr.bf16.mxu0 0
      %397 = vmatpush1.bf16.msra.mxu0 0
      %398 = vmatprep.subr.bf16.mxu0 0
      %399 = vmatpush1.bf16.msra.mxu0 0
      %400 = vmatprep.subr.bf16.mxu0 0
      %401 = vmatpush1.bf16.msra.mxu0 0
      %402 = vmatprep.subr.bf16.mxu0 0
      %403 = vmatpush1.bf16.msra.mxu0 0
      %404 = vmatprep.subr.bf16.mxu0 0
      %405 = vmatpush1.bf16.msra.mxu0 0
      %406 = vmatprep.subr.bf16.mxu0 0
      %407 = vmatpush1.bf16.msra.mxu0 0
      %408 = vmatprep.subr.bf16.mxu0 0
      %409 = vmatpush1.bf16.msra.mxu0 0
      %410 = vmatprep.subr.bf16.mxu0 0
      %411 = vmatpush1.bf16.msra.mxu0 0
      %412 = vmatprep.subr.bf16.mxu0 0
      %413 = vmatpush1.bf16.msra.mxu0 0
      %414 = vmatprep.mubr.bf16.mxu0 0
      %415 = vmatmul.mubr.bf16.gmra.mrb[0].mxu0 %v371
      %v416 = vpop.f32.mrb[0].mxu0
      %v417 = vadd.f32 %v355, %v416
      %v418 = vpop.f32.mrb[0].mxu0
      %v419 = vpop.f32.mrb[0].mxu0
      %v420 = vadd.f32 %v355, %v419
      %v421 = vpop.f32.mrb[0].mxu0
      %422 = vmatprep.mubr.bf16.mxu0 0
      %423 = vmatmul.mubr.bf16.gmra.mrb[0].mxu0 %v374
      %v424 = vpop.f32.mrb[0].mxu0
      %v425 = vadd.f32 %v355, %v424
      %v426 = vpop.f32.mrb[0].mxu0
      %v427 = vpop.f32.mrb[0].mxu0
      %v428 = vadd.f32 %v355, %v427
      %v429 = vpop.f32.mrb[0].mxu0
      %430 = vmatprep.mubr.bf16.mxu0 0
      %431 = vmatmul.mubr.bf16.gmra.mrb[0].mxu0 %v377
      %v432 = vpop.f32.mrb[0].mxu0
      %v433 = vadd.f32 %v355, %v432
      %v434 = vpop.f32.mrb[0].mxu0
      %v435 = vpop.f32.mrb[0].mxu0
      %v436 = vadd.f32 %v355, %v435
      %v437 = vpop.f32.mrb[0].mxu0
      %438 = vmatprep.mubr.bf16.mxu0 0
      %439 = vmatmul.mubr.bf16.gmra.mrb[0].mxu0 %v380
      %v440 = vpop.f32.mrb[0].mxu0
      %v441 = vadd.f32 %v355, %v440
      %v442 = vpop.f32.mrb[0].mxu0
      %v443 = vpop.f32.mrb[0].mxu0
      %v444 = vadd.f32 %v355, %v443
      %v445 = vpop.f32.mrb[0].mxu0
      %446 = vdwg.mxu0
      %vm447 = vcmask 64512
      %v448 = vsel %vm447, %v417, -inf
      %449 = vmax.xlane.f32.xlu0 %v448
      %v450 = vpop.xlane.xlu0 %449
      %v451 = vsel %vm447, %v420, -inf
      %452 = vmax.xlane.f32.xlu0 %v451
      %v453 = vpop.xlane.xlu0 %452
      %v454 = vsel %vm447, %v425, -inf
      %455 = vmax.xlane.f32.xlu0 %v454
      %v456 = vpop.xlane.xlu0 %455
      %v457 = vsel %vm447, %v428, -inf
      %458 = vmax.xlane.f32.xlu0 %v457
      %v459 = vpop.xlane.xlu0 %458
      %v460 = vsel %vm447, %v433, -inf
      %461 = vmax.xlane.f32.xlu0 %v460
      %v462 = vpop.xlane.xlu0 %461
      %v463 = vsel %vm447, %v436, -inf
      %464 = vmax.xlane.f32.xlu0 %v463
      %v465 = vpop.xlane.xlu0 %464
      %v466 = vsel %vm447, %v441, -inf
      %467 = vmax.xlane.f32.xlu0 %v466
      %v468 = vpop.xlane.xlu0 %467
      %v469 = vsel %vm447, %v444, -inf
      %470 = vmax.xlane.f32.xlu0 %v469
      %v471 = vpop.xlane.xlu0 %470
      %v472 = vsub.f32 %v417, %v450
      %v473 = vsub.f32 %v420, %v453
      %v474 = vsub.f32 %v425, %v456
      %v475 = vsub.f32 %v428, %v459
      %v476 = vsub.f32 %v433, %v462
      %v477 = vsub.f32 %v436, %v465
      %v478 = vsub.f32 %v441, %v468
      %v479 = vsub.f32 %v444, %v471
      %v480 = vmul.f32 %v472, 1.442695
      %v481 = vpow.pop %v480
      %v482 = vmul.f32 %v473, 1.442695
      %v483 = vpow.pop %v482
      %v484 = vmul.f32 %v474, 1.442695
      %v485 = vpow.pop %v484
      %v486 = vmul.f32 %v475, 1.442695
      %v487 = vpow.pop %v486
      %v488 = vmul.f32 %v476, 1.442695
      %v489 = vpow.pop %v488
      %v490 = vmul.f32 %v477, 1.442695
      %v491 = vpow.pop %v490
      %v492 = vmul.f32 %v478, 1.442695
      %v493 = vpow.pop %v492
      %v494 = vmul.f32 %v479, 1.442695
      %v495 = vpow.pop %v494
      %v496 = vsel %vm447, %v481, 0.0
      %497 = vadd.xlane.f32.xlu0 %v496
      %v498 = vpop.xlane.xlu0 %497
      %v499 = vsel %vm447, %v483, 0.0
      %500 = vadd.xlane.f32.xlu0 %v499
      %v501 = vpop.xlane.xlu0 %500
      %v502 = vsel %vm447, %v485, 0.0
      %503 = vadd.xlane.f32.xlu0 %v502
      %v504 = vpop.xlane.xlu0 %503
      %v505 = vsel %vm447, %v487, 0.0
      %506 = vadd.xlane.f32.xlu0 %v505
      %v507 = vpop.xlane.xlu0 %506
      %v508 = vsel %vm447, %v489, 0.0
      %509 = vadd.xlane.f32.xlu0 %v508
      %v510 = vpop.xlane.xlu0 %509
      %v511 = vsel %vm447, %v491, 0.0
      %512 = vadd.xlane.f32.xlu0 %v511
      %v513 = vpop.xlane.xlu0 %512
      %v514 = vsel %vm447, %v493, 0.0
      %515 = vadd.xlane.f32.xlu0 %v514
      %v516 = vpop.xlane.xlu0 %515
      %v517 = vsel %vm447, %v495, 0.0
      %518 = vadd.xlane.f32.xlu0 %v517
      %v519 = vpop.xlane.xlu0 %518
      %v520 = vlog2.pop %v498
      %v521 = vmul.f32 %v520, 0.6931472
      %v522 = vlog2.pop %v501
      %v523 = vmul.f32 %v522, 0.6931472
      %v524 = vlog2.pop %v504
      %v525 = vmul.f32 %v524, 0.6931472
      %v526 = vlog2.pop %v507
      %v527 = vmul.f32 %v526, 0.6931472
      %v528 = vlog2.pop %v510
      %v529 = vmul.f32 %v528, 0.6931472
      %v530 = vlog2.pop %v513
      %v531 = vmul.f32 %v530, 0.6931472
      %v532 = vlog2.pop %v516
      %v533 = vmul.f32 %v532, 0.6931472
      %v534 = vlog2.pop %v519
      %v535 = vmul.f32 %v534, 0.6931472
      %v536 = vsub.f32 %v472, %v521
      %v537 = vsub.f32 %v473, %v523
      %v538 = vsub.f32 %v474, %v525
      %v539 = vsub.f32 %v475, %v527
      %v540 = vsub.f32 %v476, %v529
      %v541 = vsub.f32 %v477, %v531
      %v542 = vsub.f32 %v478, %v533
      %v543 = vsub.f32 %v479, %v535
      %544 = vst.msk [vmem:[%s226] sm:$0xff] %vm447, %v536
      %545 = vst.msk [vmem:[%s226 + $0x8] sm:$0xff] %vm447, %v537
      %546 = vst.msk [vmem:[%s226 + $0x10] sm:$0xff] %vm447, %v538
      %547 = vst.msk [vmem:[%s226 + $0x18] sm:$0xff] %vm447, %v539
      %548 = vst.msk [vmem:[%s226 + $0x20] sm:$0xff] %vm447, %v540
      %549 = vst.msk [vmem:[%s226 + $0x28] sm:$0xff] %vm447, %v541
      %550 = vst.msk [vmem:[%s226 + $0x30] sm:$0xff] %vm447, %v542
      %551 = vst.msk [vmem:[%s226 + $0x38] sm:$0xff] %vm447, %v543
      %s552 = smul.u32 8, %s16
      %p553 = scmp.lt.s32.totalorder %s552, 63
      %s554 = scalar_select %p553, %s552, 63
      %s555 = smul.addr %s554, 8
      %s556 = scalar_lea.vmem %s5, %s555
      // Predicated region
      $region41: #{tpu_custom_call.1} parent=39 // pred_check
        %p557 = pneg %p144
      $region42: #{tpu_custom_call.1} parent=39 // pred_check_branch
        %559 = sbr.rel (%p557) target = $region44
      $region43: #{tpu_custom_call.1} parent=39 // pred_region
        %s560 = smul.u32 8, %s16
      $region44: #{tpu_custom_call.1} parent=39 // pred_fallthru
        _
    $region40: #{tpu_custom_call.1} parent=5 // pred_fallthru
      _
    %p561 = scmp.le.s32.totalorder 2, %s11
    // Predicated region
    $region45: #{tpu_custom_call.1} parent=5 // pred_check
      %p562 = pneg %p561
    $region46: #{tpu_custom_call.1} parent=5 // pred_check_branch
      %564 = sbr.rel (%p562) target = $region48
    $region47: #{tpu_custom_call.1} parent=5 // pred_region
      %s565 = ssub.s32 %s11, 2
      // Predicated region
      $region49: #{tpu_custom_call.1} parent=47 // pred_check
        %p566 = pneg %p150
      $region50: #{tpu_custom_call.1} parent=47 // pred_check_branch
        %568 = sbr.rel (%p566) target = $region52
      $region51: #{tpu_custom_call.1} parent=47 // pred_region
        %s569 = smul.u32 8, %s17
        %p570 = scmp.lt.s32.totalorder %s569, 63
        %s571 = scalar_select %p570, %s569, 63
        %s572 = smul.addr %s571, 8
        %s573 = scalar_lea.vmem %s5, %s572
      $region52: #{tpu_custom_call.1} parent=47 // pred_fallthru
        _
    $region48: #{tpu_custom_call.1} parent=5 // pred_fallthru
      _
  $region6: #{tpu_custom_call.1} parent=0 // loop_footer
    %s15 = sadd.s32 1, %s11
  $region7: #{tpu_custom_call.1} parent=0 // loop_footer_branch
    %10 = sbr.rel target = $region3
  $region8: #{tpu_custom_call.1} parent=0 // loop_exit
    _

</llo_original>
